<compile_context>
chip_gen: v7x
topology: tpu7x:2x2x1
jax: 0.10.0
libtpu: 0.0.40
codegen_flags: <defaults>
</compile_context>

<pallas_src>
import jax
import jax.numpy as jnp
from jax.experimental import pallas as pl
from jax.experimental.pallas import tpu as pltpu


def _dice_partials_kernel(pred_ref, targ_ref, inter_ref, psum_ref, tsum_ref):
    # pred_ref / targ_ref are 2-D VMEM tiles (leading dims squeezed via None
    # entries in the BlockSpec, so no in-kernel reshapes of the data tiles).
    p = pred_ref[...].astype(jnp.float32)
    t = targ_ref[...].astype(jnp.float32)
    inter_ref[...] = jnp.sum(p * t).reshape(1, 1)
    psum_ref[...] = jnp.sum(p).reshape(1, 1)
    tsum_ref[...] = jnp.sum(t).reshape(1, 1)


def _pick_lane(hw):
    """Largest lane width (multiple of 128) that divides H*W, or None."""
    for lane in (2048, 1024, 512, 256, 128):
        if hw % lane == 0:
            return lane
    return None


def _pick_row_tile(rows, lane, elem_bytes=4, budget_bytes=2 * 1024 * 1024):
    """Largest divisor of `rows` whose tile fits the per-buffer VMEM budget.

    Prefers sublane-aligned (multiple of 8) tiles; a full-`rows` tile is always
    layout-legal (block dim == full array dim)."""
    max_rows = max(1, budget_bytes // (lane * elem_bytes))
    if rows <= max_rows:
        return rows
    divisors = [d for d in range(1, rows) if rows % d == 0 and d <= max_rows]
    aligned = [d for d in divisors if d % 8 == 0]
    if aligned:
        return max(aligned)
    return max(divisors)  # always non-empty (contains 1)


def dice_loss(pred, target, epsilon=1e-5):
    """Pallas TPU forward of DiceLoss: 1 - (2*I + eps) / (P + T + eps),
    computed on pred[:, 1, :, :] and target.float()."""
    N, C, H, W = pred.shape
    assert C >= 2, "DiceLoss selects channel 1; pred needs at least 2 channels."
    assert target.shape == (N, H, W)
    hw = H * W

    lane = _pick_lane(hw)
    if lane is not None:
        # Lane-dense path: flatten spatial dims; last dim is a multiple of 128.
        rows = hw // lane
        row_tile = _pick_row_tile(rows, lane)
        num_chunks = rows // row_tile
        pred_in = pred.reshape(N * C, rows, lane)   # free, contiguous reshape
        targ_in = target.reshape(N, rows, lane)     # free, contiguous reshape
        pred_spec = pl.BlockSpec((None, row_tile, lane),
                                 lambda i, j: (i * C + 1, j, 0))
        targ_spec = pl.BlockSpec((None, row_tile, lane),
                                 lambda i, j: (i, j, 0))
    else:
        # Fallback (H*W not a multiple of 128): full (H, W) blocks, channel 1
        # still selected via the index_map. Lane-sparse but always legal.
        num_chunks = 1
        pred_in = pred
        targ_in = target
        pred_spec = pl.BlockSpec((None, None, H, W),
                                 lambda i, j: (i, 1, 0, 0))
        targ_spec = pl.BlockSpec((None, H, W),
                                 lambda i, j: (i, 0, 0))

    partial_shape = jax.ShapeDtypeStruct((N, num_chunks, 1, 1), jnp.float32)
    out_spec = pl.BlockSpec((None, None, 1, 1), lambda i, j: (i, j, 0, 0))

    inter_p, psum_p, tsum_p = pl.pallas_call(
        _dice_partials_kernel,
        out_shape=(partial_shape, partial_shape, partial_shape),
        grid_spec=pltpu.PrefetchScalarGridSpec(
            num_scalar_prefetch=0,
            grid=(N, num_chunks),
            in_specs=[pred_spec, targ_spec],
            out_specs=(out_spec, out_spec, out_spec),
        ),
        compiler_params=pltpu.CompilerParams(
            dimension_semantics=("parallel", "parallel"),
            vmem_limit_bytes=32 * 1024 * 1024,
        ),
    )(pred_in, targ_in)

    intersection = jnp.sum(inter_p)
    pred_sum = jnp.sum(psum_p)
    targ_sum = jnp.sum(tsum_p)
    dice = (2.0 * intersection + epsilon) / (pred_sum + targ_sum + epsilon)
    return 1.0 - dice


def dice_loss_ref(pred, target, epsilon=1e-5):
    p = pred[:, 1, :, :]
    t = target.astype(jnp.float32)
    intersection = jnp.sum(p * t)
    dice = (2.0 * intersection + epsilon) / (jnp.sum(p) + jnp.sum(t) + epsilon)
    return 1.0 - dice


if __name__ == "__main__":
    key = jax.random.PRNGKey(0)
    kp, kt = jax.random.split(key)

    N, C, H, W = 2, 4, 16, 16
    # Softmax-like predictions in [0, 1].
    pred = jax.nn.softmax(jax.random.normal(kp, (N, C, H, W), jnp.float32), axis=1)
    # Binary target mask as int8 (cuts HBM traffic for the bandwidth-bound kernel).
    target = (jax.random.uniform(kt, (N, H, W)) > 0.5).astype(jnp.int8)

    loss = dice_loss(pred, target)
    loss = jax.block_until_ready(loss)

    ref = dice_loss_ref(pred, target)
    assert jnp.allclose(loss, ref, rtol=1e-5, atol=1e-6), (loss, ref)

    print("KERNEL_OK")
</pallas_src>

<mosaic_0001>
module attributes {stable_mosaic.version = 11 : i64} {
  func.func @_dice_partials_kernel(%arg0: i32, %arg1: i32, %arg2: memref<1x1x256xf32, #tpu.memory_space<vmem>>, %arg3: memref<1x1x256xi8, #tpu.memory_space<vmem>>, %arg4: memref<1x1x1x1xf32, #tpu.memory_space<vmem>>, %arg5: memref<1x1x1x1xf32, #tpu.memory_space<vmem>>, %arg6: memref<1x1x1x1xf32, #tpu.memory_space<vmem>>) attributes {dimension_semantics = [#tpu.dimension_semantics<parallel>, #tpu.dimension_semantics<parallel>], iteration_bounds = array<i64: 2, 1>, scalar_prefetch = 0 : i64, scratch_operands = 0 : i64, tpu.core_type = #tpu.core_type<tc>, window_params = [{transform_indices = @transform_0, window_bounds = array<i64: 1, 1, 256>}, {transform_indices = @transform_1, window_bounds = array<i64: 1, 1, 256>}, {transform_indices = @transform_2, window_bounds = array<i64: 1, 1, 1, 1>}, {transform_indices = @transform_3, window_bounds = array<i64: 1, 1, 1, 1>}, {transform_indices = @transform_4, window_bounds = array<i64: 1, 1, 1, 1>}]} {
    %c0 = arith.constant 0 : index
    %c0_0 = arith.constant 0 : index
    %c0_1 = arith.constant 0 : index
    %0 = vector.load %arg2[%c0, %c0_0, %c0_1] : memref<1x1x256xf32, #tpu.memory_space<vmem>>, vector<1x1x256xf32>
    %1 = vector.shape_cast %0 : vector<1x1x256xf32> to vector<1x256xf32>
    %c0_2 = arith.constant 0 : index
    %c0_3 = arith.constant 0 : index
    %c0_4 = arith.constant 0 : index
    %2 = vector.load %arg3[%c0_2, %c0_3, %c0_4] : memref<1x1x256xi8, #tpu.memory_space<vmem>>, vector<1x1x256xi8>
    %3 = vector.shape_cast %2 : vector<1x1x256xi8> to vector<1x256xi8>
    %4 = arith.sitofp %3 : vector<1x256xi8> to vector<1x256xf32>
    %5 = arith.mulf %1, %4 : vector<1x256xf32>
    %6 = vector.shape_cast %5 : vector<1x256xf32> to vector<1x1x256xf32>
    %cst = arith.constant dense<0.000000e+00> : vector<1xf32>
    %7 = vector.multi_reduction <add>, %6, %cst [1, 2] : vector<1x1x256xf32> to vector<1xf32>
    %8 = vector.shape_cast %7 : vector<1xf32> to vector<1x1x1xf32>
    %9 = vector.extract %8[0, 0, 0] : f32 from vector<1x1x1xf32>
    %10 = vector.broadcast %9 : f32 to vector<1x1xf32>
    %c0_5 = arith.constant 0 : index
    %c0_6 = arith.constant 0 : index
    %c0_7 = arith.constant 0 : index
    %c0_8 = arith.constant 0 : index
    %11 = vector.load %arg4[%c0_5, %c0_6, %c0_7, %c0_8] : memref<1x1x1x1xf32, #tpu.memory_space<vmem>>, vector<1x1x1x1xf32>
    %12 = vector.shape_cast %11 : vector<1x1x1x1xf32> to vector<1x1xf32>
    %13 = vector.shape_cast %10 : vector<1x1xf32> to vector<1x1x1x1xf32>
    tpu.vector_store %arg4[%c0_5, %c0_6, %c0_7, %c0_8], %13 {strides = array<i32>} : memref<1x1x1x1xf32, #tpu.memory_space<vmem>>, vector<1x1x1x1xf32>,
    %14 = vector.shape_cast %1 : vector<1x256xf32> to vector<1x1x256xf32>
    %cst_9 = arith.constant dense<0.000000e+00> : vector<1xf32>
    %15 = vector.multi_reduction <add>, %14, %cst_9 [1, 2] : vector<1x1x256xf32> to vector<1xf32>
    %16 = vector.shape_cast %15 : vector<1xf32> to vector<1x1x1xf32>
    %17 = vector.extract %16[0, 0, 0] : f32 from vector<1x1x1xf32>
    %18 = vector.broadcast %17 : f32 to vector<1x1xf32>
    %c0_10 = arith.constant 0 : index
    %c0_11 = arith.constant 0 : index
    %c0_12 = arith.constant 0 : index
    %c0_13 = arith.constant 0 : index
    %19 = vector.load %arg5[%c0_10, %c0_11, %c0_12, %c0_13] : memref<1x1x1x1xf32, #tpu.memory_space<vmem>>, vector<1x1x1x1xf32>
    %20 = vector.shape_cast %19 : vector<1x1x1x1xf32> to vector<1x1xf32>
    %21 = vector.shape_cast %18 : vector<1x1xf32> to vector<1x1x1x1xf32>
    tpu.vector_store %arg5[%c0_10, %c0_11, %c0_12, %c0_13], %21 {strides = array<i32>} : memref<1x1x1x1xf32, #tpu.memory_space<vmem>>, vector<1x1x1x1xf32>,
    %22 = vector.shape_cast %4 : vector<1x256xf32> to vector<1x1x256xf32>
    %cst_14 = arith.constant dense<0.000000e+00> : vector<1xf32>
    %23 = vector.multi_reduction <add>, %22, %cst_14 [1, 2] : vector<1x1x256xf32> to vector<1xf32>
    %24 = vector.shape_cast %23 : vector<1xf32> to vector<1x1x1xf32>
    %25 = vector.extract %24[0, 0, 0] : f32 from vector<1x1x1xf32>
    %26 = vector.broadcast %25 : f32 to vector<1x1xf32>
    %c0_15 = arith.constant 0 : index
    %c0_16 = arith.constant 0 : index
    %c0_17 = arith.constant 0 : index
    %c0_18 = arith.constant 0 : index
    %27 = vector.load %arg6[%c0_15, %c0_16, %c0_17, %c0_18] : memref<1x1x1x1xf32, #tpu.memory_space<vmem>>, vector<1x1x1x1xf32>
    %28 = vector.shape_cast %27 : vector<1x1x1x1xf32> to vector<1x1xf32>
    %29 = vector.shape_cast %26 : vector<1x1xf32> to vector<1x1x1x1xf32>
    tpu.vector_store %arg6[%c0_15, %c0_16, %c0_17, %c0_18], %29 {strides = array<i32>} : memref<1x1x1x1xf32, #tpu.memory_space<vmem>>, vector<1x1x1x1xf32>,
    return
  }
  func.func @transform_0(%arg0: i32, %arg1: i32) -> (i32, i32, i32) {
    %c4_i32 = arith.constant 4 : i32
    %0 = arith.muli %arg0, %c4_i32 : i32
    %c1_i32 = arith.constant 1 : i32
    %1 = arith.addi %0, %c1_i32 : i32
    %c0_i32 = arith.constant 0 : i32
    %c0_i32_0 = arith.constant 0 : i32
    return %1, %arg1, %c0_i32 : i32, i32, i32
  }
  func.func @transform_1(%arg0: i32, %arg1: i32) -> (i32, i32, i32) {
    %c0_i32 = arith.constant 0 : i32
    %c0_i32_0 = arith.constant 0 : i32
    return %arg0, %arg1, %c0_i32 : i32, i32, i32
  }
  func.func @transform_2(%arg0: i32, %arg1: i32) -> (i32, i32, i32, i32) {
    %c0_i32 = arith.constant 0 : i32
    %c0_i32_0 = arith.constant 0 : i32
    %c0_i32_1 = arith.constant 0 : i32
    return %arg0, %arg1, %c0_i32, %c0_i32_0 : i32, i32, i32, i32
  }
  func.func @transform_3(%arg0: i32, %arg1: i32) -> (i32, i32, i32, i32) {
    %c0_i32 = arith.constant 0 : i32
    %c0_i32_0 = arith.constant 0 : i32
    %c0_i32_1 = arith.constant 0 : i32
    return %arg0, %arg1, %c0_i32, %c0_i32_0 : i32, i32, i32, i32
  }
  func.func @transform_4(%arg0: i32, %arg1: i32) -> (i32, i32, i32, i32) {
    %c0_i32 = arith.constant 0 : i32
    %c0_i32_0 = arith.constant 0 : i32
    %c0_i32_1 = arith.constant 0 : i32
    return %arg0, %arg1, %c0_i32, %c0_i32_0 : i32, i32, i32, i32
  }
}

</mosaic_0001>

<llo_original>
// kernel: tpu_custom_call.1
$region0: #{tpu_custom_call.1}
  #allocation0 [shape = 'u32[]', space=smem, size = 0x4, offset = 0x4, fixed_abs, tag = 'smem constant byte address 0x4 - core index']
  #allocation1 [shape = 'u32[144,128]{1,0:T(1,128)}', space=vmem, size = 0x12000, scoped, tag = 'internal scratch']
  %s0 = inlined_call_operand.hbm [shape: f32[8,1,256], index: 0, kind: input, shape index: {}]
  %s1 = inlined_call_operand.vmem [shape: s8[2,1,256], index: 1, kind: input, shape index: {}]
  %s2 = inlined_call_operand.vmem [shape: f32[2,1,1,1], index: 2, kind: output, shape index: {0}]
  %s3 = inlined_call_operand.vmem [shape: f32[2,1,1,1], index: 3, kind: output, shape index: {1}]
  %s4 = inlined_call_operand.vmem [shape: f32[2,1,1,1], index: 4, kind: output, shape index: {2}]
  %5 = xla_tuple %s2, %s3, %s4
  %s6 = sld [smem:[#allocation0]]
  $region61: #{tpu_custom_call.1} parent=0
    _
  %s8 = ssub.s32 1, %s6
  %s9 = scalar_select 0, %s8, %s6
  $region1: #{tpu_custom_call.1} parent=0
    #allocation2 [shape = 'u8[2048]{0}', space=vmem, size = 0x800, scoped, tag = 'input window, operand 0']
    #allocation3 [shape = 's32[2]{0}', space=sflag, size = 0x8, scoped, tag = 'scoped memory for tpu_custom_call.1']
    %10 = vsyncpa [#allocation3], 0
    %s11 = scalar_lea.sflag [#allocation3], 1
    %12 = vsyncpa %s11, 0
    loop: start=0, step=1, limit=4
    $region2: #{tpu_custom_call.1} parent=1 // loop_pre_header
      _
    $region3: #{tpu_custom_call.1} parent=1 // loop_header
      %s14 = sphi 0, %s18
      %p15 = scmp.ge.s32.totalorder %s14, 4
      %s21 = sphi 0, %s33
      %s22 = sphi 0, %s29
      %s23 = sphi 0, %s21
      %s24 = sphi 0, %s22
      %s25 = sphi 0, %s23
      %s26 = sphi 0, %s24
      %s42 = sphi 0, %s44
      %s45 = sphi 0, %s42
      %s46 = sphi 0, %s45
      %s62 = sphi 0, %s46
      %s70 = sphi 0, %s72
      %s73 = sphi 0, %s70
      %s74 = sphi 0, %s73
      %s90 = sphi 0, %s74
      %s98 = sphi 0, %s100
      %s101 = sphi 0, %s98
      %s102 = sphi 0, %s101
      %s118 = sphi 0, %s102
      %s126 = sphi 0, %s128
      %s129 = sphi 0, %s126
      %s130 = sphi 0, %s129
      %s146 = sphi 0, %s130
      %s154 = sphi 0, %s156
      %s157 = sphi 0, %s154
      %s158 = sphi 0, %s157
      %s174 = sphi 0, %s158
    $region4: #{tpu_custom_call.1} parent=1 // loop_header_branch
      %17 = sbr.rel (%p15) target = $region8
    $region5: #{tpu_custom_call.1} parent=1 // loop_body
      %s19 = ssub.s32 %s14, 1
      %s20 = ssub.s32 %s14, 2
      %s27 = sadd.s32 1, %s22
      %p28 = scmp.ge.s32.totalorder %s27, 1
      %s29 = scalar_select %p28, 0, %s27
      %s30 = sadd.s32 1, %s21
      %s31 = scalar_select %p28, %s30, %s21
      %p32 = scmp.ge.s32.totalorder %s31, 2
      %s33 = scalar_select %p32, 0, %s31
      %s34 = smul.u32 %s21, 4
      %s35 = sadd.s32 %s34, 1
      %s36 = smul.u32 %s33, 4
      %s37 = sadd.s32 %s36, 1
      %s38 = ssub.s32 %s35, %s37
      %s39 = ssub.s32 %s22, %s29
      %s40 = sor.u32 %s38, %s39
      %p41 = scmp.eq.s32.totalorder %s40, 0
      %s43 = sadd.s32 %s42, 1
      %s44 = scalar_select %p41, %s42, %s43
      %p47 = pneg %p41
      %p48 = scmp.eq.s32.totalorder %s14, 1
      %p49 = por %p47, %p48
      %p50 = scmp.ne.s32.totalorder %s42, %s45
      %p51 = scmp.eq.s32.totalorder %s14, 0
      %p52 = por %p50, %p51
      %p53 = scmp.ne.s32.totalorder %s42, %s45
      %p54 = scmp.eq.s32.totalorder %s19, 1
      %p55 = por %p53, %p54
      %p56 = scmp.ne.s32.totalorder %s45, %s46
      %p57 = scmp.eq.s32.totalorder %s19, 0
      %p58 = por %p56, %p57
      %p59 = scmp.ne.s32.totalorder %s45, %s46
      %p60 = scmp.eq.s32.totalorder %s20, 1
      %p61 = por %p59, %p60
      %p63 = scmp.ne.s32.totalorder %s46, %s62
      %p64 = scmp.eq.s32.totalorder %s20, 0
      %p65 = por %p63, %p64
      %s66 = ssub.s32 %s21, %s33
      %s67 = ssub.s32 %s22, %s29
      %s68 = sor.u32 %s66, %s67
      %p69 = scmp.eq.s32.totalorder %s68, 0
      %s71 = sadd.s32 %s70, 1
      %s72 = scalar_select %p69, %s70, %s71
      %p75 = pneg %p69
      %p76 = scmp.eq.s32.totalorder %s14, 1
      %p77 = por %p75, %p76
      %p78 = scmp.ne.s32.totalorder %s70, %s73
      %p79 = scmp.eq.s32.totalorder %s14, 0
      %p80 = por %p78, %p79
      %p81 = scmp.ne.s32.totalorder %s70, %s73
      %p82 = scmp.eq.s32.totalorder %s19, 1
      %p83 = por %p81, %p82
      %p84 = scmp.ne.s32.totalorder %s73, %s74
      %p85 = scmp.eq.s32.totalorder %s19, 0
      %p86 = por %p84, %p85
      %p87 = scmp.ne.s32.totalorder %s73, %s74
      %p88 = scmp.eq.s32.totalorder %s20, 1
      %p89 = por %p87, %p88
      %p91 = scmp.ne.s32.totalorder %s74, %s90
      %p92 = scmp.eq.s32.totalorder %s20, 0
      %p93 = por %p91, %p92
      %s94 = ssub.s32 %s21, %s33
      %s95 = ssub.s32 %s22, %s29
      %s96 = sor.u32 %s94, %s95
      %p97 = scmp.eq.s32.totalorder %s96, 0
      %s99 = sadd.s32 %s98, 1
      %s100 = scalar_select %p97, %s98, %s99
      %p103 = pneg %p97
      %p104 = scmp.eq.s32.totalorder %s14, 1
      %p105 = por %p103, %p104
      %p106 = scmp.ne.s32.totalorder %s98, %s101
      %p107 = scmp.eq.s32.totalorder %s14, 0
      %p108 = por %p106, %p107
      %p109 = scmp.ne.s32.totalorder %s98, %s101
      %p110 = scmp.eq.s32.totalorder %s19, 1
      %p111 = por %p109, %p110
      %p112 = scmp.ne.s32.totalorder %s101, %s102
      %p113 = scmp.eq.s32.totalorder %s19, 0
      %p114 = por %p112, %p113
      %p115 = scmp.ne.s32.totalorder %s101, %s102
      %p116 = scmp.eq.s32.totalorder %s20, 1
      %p117 = por %p115, %p116
      %p119 = scmp.ne.s32.totalorder %s102, %s118
      %p120 = scmp.eq.s32.totalorder %s20, 0
      %p121 = por %p119, %p120
      %s122 = ssub.s32 %s21, %s33
      %s123 = ssub.s32 %s22, %s29
      %s124 = sor.u32 %s122, %s123
      %p125 = scmp.eq.s32.totalorder %s124, 0
      %s127 = sadd.s32 %s126, 1
      %s128 = scalar_select %p125, %s126, %s127
      %p131 = pneg %p125
      %p132 = scmp.eq.s32.totalorder %s14, 1
      %p133 = por %p131, %p132
      %p134 = scmp.ne.s32.totalorder %s126, %s129
      %p135 = scmp.eq.s32.totalorder %s14, 0
      %p136 = por %p134, %p135
      %p137 = scmp.ne.s32.totalorder %s126, %s129
      %p138 = scmp.eq.s32.totalorder %s19, 1
      %p139 = por %p137, %p138
      %p140 = scmp.ne.s32.totalorder %s129, %s130
      %p141 = scmp.eq.s32.totalorder %s19, 0
      %p142 = por %p140, %p141
      %p143 = scmp.ne.s32.totalorder %s129, %s130
      %p144 = scmp.eq.s32.totalorder %s20, 1
      %p145 = por %p143, %p144
      %p147 = scmp.ne.s32.totalorder %s130, %s146
      %p148 = scmp.eq.s32.totalorder %s20, 0
      %p149 = por %p147, %p148
      %s150 = ssub.s32 %s21, %s33
      %s151 = ssub.s32 %s22, %s29
      %s152 = sor.u32 %s150, %s151
      %p153 = scmp.eq.s32.totalorder %s152, 0
      %s155 = sadd.s32 %s154, 1
      %s156 = scalar_select %p153, %s154, %s155
      %p159 = pneg %p153
      %p160 = scmp.eq.s32.totalorder %s14, 1
      %p161 = por %p159, %p160
      %p162 = scmp.ne.s32.totalorder %s154, %s157
      %p163 = scmp.eq.s32.totalorder %s14, 0
      %p164 = por %p162, %p163
      %p165 = scmp.ne.s32.totalorder %s154, %s157
      %p166 = scmp.eq.s32.totalorder %s19, 1
      %p167 = por %p165, %p166
      %p168 = scmp.ne.s32.totalorder %s157, %s158
      %p169 = scmp.eq.s32.totalorder %s19, 0
      %p170 = por %p168, %p169
      %p171 = scmp.ne.s32.totalorder %s157, %s158
      %p172 = scmp.eq.s32.totalorder %s20, 1
      %p173 = por %p171, %p172
      %p175 = scmp.ne.s32.totalorder %s158, %s174
      %p176 = scmp.eq.s32.totalorder %s20, 0
      %p177 = por %p175, %p176
      %p178 = scmp.le.s32.totalorder 1, %s14
      %p179 = scmp.lt.s32.totalorder %s14, 3
      %p180 = pnand %p178, %p179
      %p181 = pneg %p180
      // Predicated region
      $region9: #{tpu_custom_call.1} parent=5 // pred_check
        _
      $region10: #{tpu_custom_call.1} parent=5 // pred_check_branch
        %183 = sbr.rel (%p180) target = $region12
      $region11: #{tpu_custom_call.1} parent=5 // pred_region
        %s184 = ssub.s32 %s14, 1
      $region12: #{tpu_custom_call.1} parent=5 // pred_fallthru
        _
      %p185 = scmp.lt.s32.totalorder %s14, 2
      // Predicated region
      $region13: #{tpu_custom_call.1} parent=5 // pred_check
        %p186 = pneg %p185
      $region14: #{tpu_custom_call.1} parent=5 // pred_check_branch
        %188 = sbr.rel (%p186) target = $region16
      $region15: #{tpu_custom_call.1} parent=5 // pred_region
        // Predicated region
        $region17: #{tpu_custom_call.1} parent=15 // pred_check
          %p189 = pneg %p52
        $region18: #{tpu_custom_call.1} parent=15 // pred_check_branch
          %191 = sbr.rel (%p189) target = $region20
        $region19: #{tpu_custom_call.1} parent=15 // pred_region
          %s192 = sand.u32 %s42, 1
          %s193 = scalar_lea.sflag [#allocation3], %s192
          %s194 = sand.u32 %s42, 1
          %s195 = smul.addr %s194, 2
          %s196 = scalar_lea.vmem [#allocation2], %s195
          %s197 = smul.u32 %s21, 4
          %s198 = sadd.s32 %s197, 1
          %s200 = ssub.s32 32, 32
          %201 = vsyncadd %s193, %s200
          %s202 = smul.addr %s22, 2
          %s203 = smul.addr %s198, 2
          %s204 = sadd.s32 %s202, %s203
          %s205 = smul.addr %s204, 16
          %s206 = scalar_lea.hbm %s0, %s205
          %s208 = sshll.u32 %s196, 4
          %s209 = int_to_ptr.vmem [resolvable:$true] %s208
          %211 = dma.hbm_to_vmem [thread:$0]  %s206, 32, %s209, %s193
        $region20: #{tpu_custom_call.1} parent=15 // pred_fallthru
          _
        // Predicated region
        $region21: #{tpu_custom_call.1} parent=15 // pred_check
          %p212 = pneg %p80
        $region22: #{tpu_custom_call.1} parent=15 // pred_check_branch
          %214 = sbr.rel (%p212) target = $region24
        $region23: #{tpu_custom_call.1} parent=15 // pred_region
          %p215 = scmp.lt.s32.totalorder %s21, 1
          %s216 = scalar_select %p215, %s21, 1
          %p217 = scmp.lt.s32.totalorder %s22, 0
          %s218 = scalar_select %p217, %s22, 0
          %s219 = smul.addr %s218, 2
          %s220 = smul.addr %s216, 2
          %s221 = sadd.s32 %s219, %s220
          %s222 = scalar_lea.vmem %s1, %s221
        $region24: #{tpu_custom_call.1} parent=15 // pred_fallthru
          _
      $region16: #{tpu_custom_call.1} parent=5 // pred_fallthru
        _
      %p223 = scmp.le.s32.totalorder 1, %s14
      %p224 = scmp.lt.s32.totalorder %s14, 3
      %p225 = pnand %p223, %p224
      %p226 = pneg %p225
      // Predicated region
      $region25: #{tpu_custom_call.1} parent=5 // pred_check
        _
      $region26: #{tpu_custom_call.1} parent=5 // pred_check_branch
        %228 = sbr.rel (%p225) target = $region28
      $region27: #{tpu_custom_call.1} parent=5 // pred_region
        %s229 = ssub.s32 %s14, 1
        %s230 = sand.u32 %s45, 1
        %s231 = scalar_lea.sflag [#allocation3], %s230
        %s232 = sand.u32 %s45, 1
        %s233 = smul.addr %s232, 2
        %s234 = scalar_lea.vmem [#allocation2], %s233
        // Predicated region
        $region29: #{tpu_custom_call.1} parent=27 // pred_check
          %p235 = pneg %p58
        $region30: #{tpu_custom_call.1} parent=27 // pred_check_branch
          %237 = sbr.rel (%p235) target = $region32
        $region31: #{tpu_custom_call.1} parent=27 // pred_region
          %238 = dma.done %s231, 32
        $region32: #{tpu_custom_call.1} parent=27 // pred_fallthru
          _
        %s239 = sand.u32 %s45, 1
        %s240 = scalar_lea.sflag [#allocation3], %s239
        %s241 = sand.u32 %s45, 1
        %s242 = smul.addr %s241, 2
        %s243 = scalar_lea.vmem [#allocation2], %s242
        %p244 = pneg %p58
        %p245 = pneg %p55
        %p246 = scmp.lt.s32.totalorder %s23, 1
        %s247 = scalar_select %p246, %s23, 1
        %p248 = scmp.lt.s32.totalorder %s24, 0
        %s249 = scalar_select %p248, %s24, 0
        %s250 = smul.addr %s249, 2
        %s251 = smul.addr %s247, 2
        %s252 = sadd.s32 %s250, %s251
        %s253 = scalar_lea.vmem %s1, %s252
        %p254 = pneg %p86
        %p255 = pneg %p83
        %p256 = pneg %p114
        %p257 = pneg %p111
        %p258 = scmp.lt.s32.totalorder %s23, 1
        %s259 = scalar_select %p258, %s23, 1
        %p260 = scmp.lt.s32.totalorder %s24, 0
        %s261 = scalar_select %p260, %s24, 0
        %s262 = sadd.s32 %s261, %s259
        %s263 = scalar_lea.vmem %s2, %s262
        %p264 = pneg %p142
        %p265 = pneg %p139
        %p266 = scmp.lt.s32.totalorder %s23, 1
        %s267 = scalar_select %p266, %s23, 1
        %p268 = scmp.lt.s32.totalorder %s24, 0
        %s269 = scalar_select %p268, %s24, 0
        %s270 = sadd.s32 %s269, %s267
        %s271 = scalar_lea.vmem %s3, %s270
        %p272 = pneg %p170
        %p273 = pneg %p167
        %p274 = scmp.lt.s32.totalorder %s23, 1
        %s275 = scalar_select %p274, %s23, 1
        %p276 = scmp.lt.s32.totalorder %s24, 0
        %s277 = scalar_select %p276, %s24, 0
        %s278 = sadd.s32 %s277, %s275
        %s279 = scalar_lea.vmem %s4, %s278
        %s280 = smul.u32 %s23, 4
        %s281 = sadd.s32 %s280, 1
        %p282 = scmp.lt.s32.totalorder %s23, 1
        %s283 = scalar_select %p282, %s23, 1
        %p284 = scmp.lt.s32.totalorder %s24, 0
        %s285 = scalar_select %p284, %s24, 0
        %s286 = smul.addr %s285, 2
        %s287 = smul.addr %s283, 2
        %s288 = sadd.s32 %s286, %s287
        %s289 = scalar_lea.vmem %s1, %s288
        %p290 = scmp.lt.s32.totalorder %s23, 1
        %s291 = scalar_select %p290, %s23, 1
        %p292 = scmp.lt.s32.totalorder %s24, 0
        %s293 = scalar_select %p292, %s24, 0
        %s294 = sadd.s32 %s293, %s291
        %s295 = scalar_lea.vmem %s2, %s294
        %p296 = scmp.lt.s32.totalorder %s23, 1
        %s297 = scalar_select %p296, %s23, 1
        %p298 = scmp.lt.s32.totalorder %s24, 0
        %s299 = scalar_select %p298, %s24, 0
        %s300 = sadd.s32 %s299, %s297
        %s301 = scalar_lea.vmem %s3, %s300
        %p302 = scmp.lt.s32.totalorder %s23, 1
        %s303 = scalar_select %p302, %s23, 1
        %p304 = scmp.lt.s32.totalorder %s24, 0
        %s305 = scalar_select %p304, %s24, 0
        %s306 = sadd.s32 %s305, %s303
        %s307 = scalar_lea.vmem %s4, %s306
        %v308 = vld [vmem:[%s234] sm:$0x3]
        %v309 = vld [vmem:[%s289] sm:$0x3]
        %v310 = vunpack.c.0.s8 %v309
        %v311 = vcvt.s32.f32 %v310
        %v314 = vunpack.c.l.s4 1966171168
        %v315 = vunpack.c.0.s8 %v314
        %v316 = vlaneseq
        %v317 = vshrl.u32 %v316, 7
        %v318 = vsub.s32 %v315, %v317
        %v319 = vrot.slane %v311, %v318
        %v321 = vunpack.c.l.s4 1966171168
        %v322 = vunpack.c.0.s8 %v321
        %v323 = vlaneseq
        %v324 = vshrl.u32 %v323, 7
        %v325 = vsub.s32 %v322, %v324
        %v326 = vrot.slane %v319, %v325
        %v328 = vmul.f32 %v308, %v326
        %v330 = vlaneseq
        %v331 = vshrl.u32 %v330, 7
        %v332 = vsub.s32 0, %v331
        %v333 = vrot.slane %v328, %v332
        %v334 = vlaneseq
        %v335 = vshrl.u32 %v334, 7
        %v336 = vsub.s32 1, %v335
        %v337 = vrot.slane %v328, %v336
        %vm340 = vcmask 1040384
        %v341 = vsel %vm340, %v333, 0.0
        %v342 = vsel %vm340, %v337, 0.0
        %v343 = vadd.f32 %v341, %v342
        %344 = vadd.xlane.f32.xlu0 %v343
        %v345 = vpop.xlane.xlu0 %344
        %v346 = vrot.slane %v345, 4
        %v347 = vadd.f32 %v345, %v346
        %v348 = vrot.slane %v347, 2
        %v349 = vadd.f32 %v347, %v348
        %v350 = vrot.slane %v349, 1
        %v351 = vadd.f32 %v349, %v350
        %s352 = vtos %v351
        %v353 = vstv %s352
        %vm354 = vcmask 0
        %355 = vst.msk [vmem:[%s295] sm:$0x1] %vm354, %v353
        %v357 = vlaneseq
        %v358 = vshrl.u32 %v357, 7
        %v359 = vsub.s32 0, %v358
        %v360 = vrot.slane %v308, %v359
        %v361 = vlaneseq
        %v362 = vshrl.u32 %v361, 7
        %v363 = vsub.s32 1, %v362
        %v364 = vrot.slane %v308, %v363
        %v367 = vsel %vm340, %v360, 0.0
        %v368 = vsel %vm340, %v364, 0.0
        %v369 = vadd.f32 %v367, %v368
        %370 = vadd.xlane.f32.xlu0 %v369
        %v371 = vpop.xlane.xlu0 %370
        %v372 = vrot.slane %v371, 4
        %v373 = vadd.f32 %v371, %v372
        %v374 = vrot.slane %v373, 2
        %v375 = vadd.f32 %v373, %v374
        %v376 = vrot.slane %v375, 1
        %v377 = vadd.f32 %v375, %v376
        %s378 = vtos %v377
        %v379 = vstv %s378
        %380 = vst.msk [vmem:[%s301] sm:$0x1] %vm354, %v379
        %v381 = vlaneseq
        %v382 = vshrl.u32 %v381, 7
        %v383 = vsub.s32 0, %v382
        %v384 = vrot.slane %v311, %v383
        %v385 = vlaneseq
        %v386 = vshrl.u32 %v385, 7
        %v387 = vsub.s32 4, %v386
        %v388 = vrot.slane %v311, %v387
        %v391 = vsel %vm340, %v384, 0.0
        %v392 = vsel %vm340, %v388, 0.0
        %v393 = vadd.f32 %v391, %v392
        %394 = vadd.xlane.f32.xlu0 %v393
        %v395 = vpop.xlane.xlu0 %394
        %v396 = vrot.slane %v395, 4
        %v397 = vadd.f32 %v395, %v396
        %v398 = vrot.slane %v397, 2
        %v399 = vadd.f32 %v397, %v398
        %v400 = vrot.slane %v399, 1
        %v401 = vadd.f32 %v399, %v400
        %s402 = vtos %v401
        %v403 = vstv %s402
        %404 = vst.msk [vmem:[%s307] sm:$0x1] %vm354, %v403
        %p405 = scmp.lt.s32.totalorder %s23, 1
        %s406 = scalar_select %p405, %s23, 1
        %p407 = scmp.lt.s32.totalorder %s24, 0
        %s408 = scalar_select %p407, %s24, 0
        %s409 = sadd.s32 %s408, %s406
        %s410 = scalar_lea.vmem %s2, %s409
        %p411 = scmp.lt.s32.totalorder %s23, 1
        %s412 = scalar_select %p411, %s23, 1
        %p413 = scmp.lt.s32.totalorder %s24, 0
        %s414 = scalar_select %p413, %s24, 0
        %s415 = sadd.s32 %s414, %s412
        %s416 = scalar_lea.vmem %s3, %s415
        %p417 = scmp.lt.s32.totalorder %s23, 1
        %s418 = scalar_select %p417, %s23, 1
        %p419 = scmp.lt.s32.totalorder %s24, 0
        %s420 = scalar_select %p419, %s24, 0
        %s421 = sadd.s32 %s420, %s418
        %s422 = scalar_lea.vmem %s4, %s421
        // Predicated region
        $region33: #{tpu_custom_call.1} parent=27 // pred_check
          %p423 = pneg %p111
        $region34: #{tpu_custom_call.1} parent=27 // pred_check_branch
          %425 = sbr.rel (%p423) target = $region36
        $region35: #{tpu_custom_call.1} parent=27 // pred_region
          _
        $region36: #{tpu_custom_call.1} parent=27 // pred_fallthru
          _
        // Predicated region
        $region37: #{tpu_custom_call.1} parent=27 // pred_check
          %p426 = pneg %p139
        $region38: #{tpu_custom_call.1} parent=27 // pred_check_branch
          %428 = sbr.rel (%p426) target = $region40
        $region39: #{tpu_custom_call.1} parent=27 // pred_region
          _
        $region40: #{tpu_custom_call.1} parent=27 // pred_fallthru
          _
        // Predicated region
        $region41: #{tpu_custom_call.1} parent=27 // pred_check
          %p429 = pneg %p167
        $region42: #{tpu_custom_call.1} parent=27 // pred_check_branch
          %431 = sbr.rel (%p429) target = $region44
        $region43: #{tpu_custom_call.1} parent=27 // pred_region
          _
        $region44: #{tpu_custom_call.1} parent=27 // pred_fallthru
          _
      $region28: #{tpu_custom_call.1} parent=5 // pred_fallthru
        _
      %p432 = scmp.le.s32.totalorder 2, %s14
      // Predicated region
      $region45: #{tpu_custom_call.1} parent=5 // pred_check
        %p433 = pneg %p432
      $region46: #{tpu_custom_call.1} parent=5 // pred_check_branch
        %435 = sbr.rel (%p433) target = $region48
      $region47: #{tpu_custom_call.1} parent=5 // pred_region
        %s436 = ssub.s32 %s14, 2
        // Predicated region
        $region49: #{tpu_custom_call.1} parent=47 // pred_check
          %p437 = pneg %p117
        $region50: #{tpu_custom_call.1} parent=47 // pred_check_branch
          %439 = sbr.rel (%p437) target = $region52
        $region51: #{tpu_custom_call.1} parent=47 // pred_region
          %p440 = scmp.lt.s32.totalorder %s25, 1
          %s441 = scalar_select %p440, %s25, 1
          %p442 = scmp.lt.s32.totalorder %s26, 0
          %s443 = scalar_select %p442, %s26, 0
          %s444 = sadd.s32 %s443, %s441
          %s445 = scalar_lea.vmem %s2, %s444
        $region52: #{tpu_custom_call.1} parent=47 // pred_fallthru
          _
        // Predicated region
        $region53: #{tpu_custom_call.1} parent=47 // pred_check
          %p446 = pneg %p145
        $region54: #{tpu_custom_call.1} parent=47 // pred_check_branch
          %448 = sbr.rel (%p446) target = $region56
        $region55: #{tpu_custom_call.1} parent=47 // pred_region
          %p449 = scmp.lt.s32.totalorder %s25, 1
          %s450 = scalar_select %p449, %s25, 1
          %p451 = scmp.lt.s32.totalorder %s26, 0
          %s452 = scalar_select %p451, %s26, 0
          %s453 = sadd.s32 %s452, %s450
          %s454 = scalar_lea.vmem %s3, %s453
        $region56: #{tpu_custom_call.1} parent=47 // pred_fallthru
          _
        // Predicated region
        $region57: #{tpu_custom_call.1} parent=47 // pred_check
          %p455 = pneg %p173
        $region58: #{tpu_custom_call.1} parent=47 // pred_check_branch
          %457 = sbr.rel (%p455) target = $region60
        $region59: #{tpu_custom_call.1} parent=47 // pred_region
          %p458 = scmp.lt.s32.totalorder %s25, 1
          %s459 = scalar_select %p458, %s25, 1
          %p460 = scmp.lt.s32.totalorder %s26, 0
          %s461 = scalar_select %p460, %s26, 0
          %s462 = sadd.s32 %s461, %s459
          %s463 = scalar_lea.vmem %s4, %s462
        $region60: #{tpu_custom_call.1} parent=47 // pred_fallthru
          _
      $region48: #{tpu_custom_call.1} parent=5 // pred_fallthru
        _
    $region6: #{tpu_custom_call.1} parent=1 // loop_footer
      %s18 = sadd.s32 1, %s14
    $region7: #{tpu_custom_call.1} parent=1 // loop_footer_branch
      %13 = sbr.rel target = $region3
    $region8: #{tpu_custom_call.1} parent=1 // loop_exit
      _
    %464 = vsyncpa [#allocation3], 1
    %s465 = scalar_lea.sflag [#allocation3], 1
    %466 = vsyncpa %s465, 1

</llo_original>
